<compile_context>
chip_gen: v7x
topology: tpu7x:2x2x1
jax: 0.10.0
libtpu: 0.0.40
codegen_flags: <defaults>
</compile_context>

<pallas_src>
import jax
import jax.numpy as jnp
from jax import lax
from jax.experimental import pallas as pl
from jax.experimental.pallas import tpu as pltpu


def _round_up(x, m):
    return ((x + m - 1) // m) * m


def _make_fp_kernel(post_normalize, gather_bf16):
    def kernel(aug1_ref, aug2_ref, pts2_ref, out_ref):
        """One (batch, N-tile) block: 3-NN inverse-distance interpolation.

        aug1_ref: (C+2, tN)  [xyz1; |xyz1|^2; 1]      (f32, channel-first)
        aug2_ref: (C+2, Sp)  [-2*xyz2; 1; |xyz2|^2(+pad bias)]
        pts2_ref: (Sp, Dp)   center features (S, D padded)
        out_ref : (tN, Dp)   interpolated features
        """
        a1 = aug1_ref[...]                                    # (C+2, tN) f32
        a2 = aug2_ref[...]                                    # (C+2, Sp) f32
        tn = a1.shape[1]
        sp = a2.shape[1]

        # Squared pairwise distances from a single MXU matmul (K = C+2):
        #   d[n,s] = sum_c x1[c,n]*(-2 x2[c,s]) + |x1[:,n]|^2*1 + 1*|x2[:,s]|^2
        d = lax.dot_general(a1, a2, (((0,), (0,)), ((), ())),
                            preferred_element_type=jnp.float32)   # (tN, Sp)
        # guard 1/(d+eps) against tiny negatives from catastrophic cancellation
        d = jnp.maximum(d, 0.0)

        # 3 nearest centers per query: iterative (min, first-occurrence argmin),
        # accumulating scattered reciprocal weights and the normalizer.
        col_ids = lax.broadcasted_iota(jnp.int32, (tn, sp), 1)    # (tN, Sp)
        dd = d
        w_num = jnp.zeros((tn, sp), jnp.float32)
        norm = jnp.zeros((tn, 1), jnp.float32)
        for _ in range(3):
            dmin = jnp.min(dd, axis=-1, keepdims=True)            # (tN, 1)
            idx_min = jnp.min(jnp.where(dd == dmin, col_ids, sp),
                              axis=-1, keepdims=True)             # (tN, 1)
            sel = col_ids == idx_min                              # (tN, Sp) one-hot
            recip = pl.reciprocal(dmin + 1e-8, approx=False)      # (tN, 1) EUP
            w_num = w_num + jnp.where(sel, recip, 0.0)
            norm = norm + recip
            dd = jnp.where(sel, jnp.inf, dd)

        inv_norm = pl.reciprocal(norm, approx=False)              # (tN, 1)
        # Normalize on the cheaper side of the gather matmul.
        w = w_num if post_normalize else w_num * inv_norm         # (tN, Sp)

        # Gather + weighted sum as ONE MXU matmul: out[n,:] = sum_s w[n,s] * p2[s,:]
        p2 = pts2_ref[...]
        if gather_bf16:
            out = jnp.dot(w.astype(jnp.bfloat16), p2.astype(jnp.bfloat16),
                          preferred_element_type=jnp.float32)     # (tN, Dp)
        else:
            out = jnp.dot(w, p2.astype(jnp.float32),
                          preferred_element_type=jnp.float32)
        if post_normalize:
            out = out * inv_norm
        out_ref[...] = out.astype(out_ref.dtype)

    return kernel


def pointnet_feature_propagation(xyz1, xyz2, points1, points2, *,
                                 tile_n=None,
                                 vmem_limit_bytes=None,
                                 gather_in_bf16=None):
    """JAX/Pallas equivalent of PointNetFeaturePropagation.forward.

    xyz1: [B, C, N], xyz2: [B, C, S], points1: [B, D, N] (unused),
    points2: [B, S, D] (the dim indexed by `index_points`).  Returns [B, N, D].
    """
    del points1  # not used by the reference forward
    B, C, N = xyz1.shape
    B2, C2, S = xyz2.shape
    B3, S2, D = points2.shape
    assert (B, C) == (B2, C2) and B == B3 and S2 == S

    if S == 1:
        # PyTorch branch: points2.repeat(1, N, 1)  ([B,1,D] -> [B,N,D]); trivial glue.
        return jnp.tile(points2, (1, N, 1))
    assert S >= 3, "general branch requires at least 3 centers"

    if gather_in_bf16 is None:
        gather_in_bf16 = points2.dtype == jnp.bfloat16

    # --- lane-dense padding of the feature axis and the center axis.
    d_pad = max(128, _round_up(D, 128))
    s_pad = _round_up(S, 128)

    # --- VMEM budget: v5e/v6e have 128 MiB physical, v7x only 64 MiB per TC.
    if vmem_limit_bytes is None:
        try:
            cap = int(pltpu.get_tpu_info().vmem_capacity_bytes)
        except Exception:
            cap = 64 * 1024 * 1024        # conservative fallback (safe everywhere)
        vmem_limit_bytes = min(int(cap * 0.85), 100 * 1024 * 1024)

    pts2_dtype = jnp.bfloat16 if gather_in_bf16 else points2.dtype

    def vmem_estimate(tile):
        b = 0
        b += 2 * 8 * tile * 4                                      # aug1 block (dbl-buf)
        b += 2 * 8 * s_pad * 4                                     # aug2 block
        b += 2 * s_pad * d_pad * jnp.dtype(pts2_dtype).itemsize    # pts2 block
        b += 2 * tile * d_pad * jnp.dtype(points2.dtype).itemsize  # out block
        b += 7 * tile * s_pad * 4                                  # live (tile, S) temps
        b += 2 * tile * d_pad * 4                                  # f32 matmul out / scale
        return b

    # --- tile sizing: large MXU-friendly query tiles, shrunk to fit the VMEM budget.
    if N >= 128:
        cap_tile = min(512 if tile_n is None else max(128, tile_n), N)
        tile_eff = max(128, (cap_tile // 128) * 128)
        while tile_eff > 128 and vmem_estimate(tile_eff) > vmem_limit_bytes:
            tile_eff -= 128
    else:
        tile_eff = _round_up(N, 8)
    # TODO(synk): for very large S*D where even tile=128 exceeds the VMEM budget, an
    # S-chunked streaming top-3 would be needed; not implemented here.
    n_pad = _round_up(N, tile_eff)

    # --- build augmented channel-first position arrays (fuses with the padding pass):
    #   aug1 rows = [xyz1; |xyz1|^2; 1],  aug2 rows = [-2*xyz2; 1; |xyz2|^2]
    # so the in-kernel distance matrix is a single K = C+2 MXU matmul.
    xyz1f = xyz1.astype(jnp.float32)
    xyz2f = xyz2.astype(jnp.float32)
    aug1 = jnp.concatenate(
        [xyz1f,
         jnp.sum(xyz1f * xyz1f, axis=1, keepdims=True),
         jnp.ones((B, 1, N), jnp.float32)], axis=1)                # (B, C+2, N)
    aug2 = jnp.concatenate(
        [-2.0 * xyz2f,
         jnp.ones((B, 1, S), jnp.float32),
         jnp.sum(xyz2f * xyz2f, axis=1, keepdims=True)], axis=1)   # (B, C+2, S)
    if n_pad != N:
        aug1 = jnp.pad(aug1, ((0, 0), (0, 0), (0, n_pad - N)))
    if s_pad != S:
        aug2 = jnp.pad(aug2, ((0, 0), (0, 0), (0, s_pad - S)))
        # padded centers: +1e30 distance bias (via the |xyz2|^2 row) -> never selected
        aug2 = aug2.at[:, C + 1, S:].set(jnp.float32(1e30))

    pts2_p = points2
    if (s_pad, d_pad) != (S, D):
        pts2_p = jnp.pad(pts2_p, ((0, 0), (0, s_pad - S), (0, d_pad - D)))
    if pts2_p.dtype != jnp.dtype(pts2_dtype):
        pts2_p = pts2_p.astype(pts2_dtype)

    post_normalize = d_pad <= s_pad          # scale whichever side is smaller
    kernel = _make_fp_kernel(post_normalize, gather_in_bf16)

    grid = (B, n_pad // tile_eff)

    out = pl.pallas_call(
        kernel,
        out_shape=jax.ShapeDtypeStruct((B, n_pad, d_pad), points2.dtype),
        grid=grid,
        in_specs=[
            # channel-first positions: points on the 128-lane axis (C+2 pads to 8 sublanes)
            pl.BlockSpec((None, C + 2, tile_eff), lambda b, i: (b, 0, i)),
            # xyz2 / points2 blocks are invariant in `i` -> fetched once per batch.
            pl.BlockSpec((None, C + 2, s_pad), lambda b, i: (b, 0, 0)),
            pl.BlockSpec((None, s_pad, d_pad), lambda b, i: (b, 0, 0)),
        ],
        # lane-dense output store (D padded to a multiple of 128).
        out_specs=pl.BlockSpec((None, tile_eff, d_pad), lambda b, i: (b, i, 0)),
        compiler_params=pltpu.CompilerParams(
            dimension_semantics=("parallel", "parallel"),
            vmem_limit_bytes=vmem_limit_bytes,
        ),
    )(aug1, aug2, pts2_p)

    if (n_pad, d_pad) != (N, D):
        out = out[:, :N, :D]
    return out


def _reference_jax(xyz1, xyz2, points2):
    """Pure-JAX reference mirroring the PyTorch forward (for verification)."""
    x1 = jnp.transpose(xyz1, (0, 2, 1)).astype(jnp.float32)   # [B,N,C]
    x2 = jnp.transpose(xyz2, (0, 2, 1)).astype(jnp.float32)   # [B,S,C]
    d = (-2.0 * jnp.einsum("bnc,bsc->bns", x1, x2,
                           precision=lax.Precision.HIGHEST)
         + jnp.sum(x1 * x1, -1)[:, :, None]
         + jnp.sum(x2 * x2, -1)[:, None, :])
    neg_d3, idx = lax.top_k(-d, 3)
    dists = -neg_d3
    recip = 1.0 / (dists + 1e-8)
    weight = recip / jnp.sum(recip, axis=-1, keepdims=True)
    gathered = jnp.take_along_axis(points2.astype(jnp.float32)[:, None, :, :],
                                   idx[:, :, :, None], axis=2)        # [B,N,3,D]
    return jnp.sum(gathered * weight[..., None], axis=2)


if __name__ == "__main__":
    key = jax.random.PRNGKey(0)

    def run_case(B, C, N, S, D):
        ks = jax.random.split(jax.random.fold_in(key, N * 1_000_003 + S * 131 + D), 4)
        xyz1 = jax.random.normal(ks[0], (B, C, N), dtype=jnp.float32)
        xyz2 = jax.random.normal(ks[1], (B, C, S), dtype=jnp.float32)
        points1 = jax.random.normal(ks[2], (B, D, N), dtype=jnp.float32)  # unused
        points2 = jax.random.normal(ks[3], (B, S, D), dtype=jnp.float32)

        out = jax.block_until_ready(
            pointnet_feature_propagation(xyz1, xyz2, points1, points2))
        ref = jax.block_until_ready(_reference_jax(xyz1, xyz2, points2))
        assert out.shape == (B, N, D)
        err = jnp.max(jnp.abs(out - ref))
        assert jnp.allclose(out, ref, atol=1e-3, rtol=1e-3), (
            f"mismatch vs reference (max abs diff = {err})")

    # tiny single-tile case (S and D padded to 128, post-normalize path)
    run_case(B=2, C=3, N=16, S=8, D=32)
    # single 384-point tile per batch (S padded 16->128, D padded 96->128)
    run_case(B=2, C=3, N=384, S=16, D=96)
    # multi-tile with N padding 200->256 and d_pad > s_pad (pre-normalize path)
    run_case(B=1, C=3, N=200, S=40, D=200)

    print("KERNEL_OK")
</pallas_src>

<mosaic_0001>
module attributes {stable_mosaic.version = 11 : i64} {
  func.func @kernel(%arg0: i32, %arg1: i32, %arg2: memref<1x5x16xf32, #tpu.memory_space<vmem>>, %arg3: memref<1x5x128xf32, #tpu.memory_space<vmem>>, %arg4: memref<1x128x128xf32, #tpu.memory_space<vmem>>, %arg5: memref<1x16x128xf32, #tpu.memory_space<vmem>>) attributes {dimension_semantics = [#tpu.dimension_semantics<parallel>, #tpu.dimension_semantics<parallel>], iteration_bounds = array<i64: 2, 1>, scalar_prefetch = 0 : i64, scratch_operands = 0 : i64, tpu.core_type = #tpu.core_type<tc>, window_params = [{transform_indices = @transform_0, window_bounds = array<i64: 1, 5, 16>}, {transform_indices = @transform_1, window_bounds = array<i64: 1, 5, 128>}, {transform_indices = @transform_2, window_bounds = array<i64: 1, 128, 128>}, {transform_indices = @transform_3, window_bounds = array<i64: 1, 16, 128>}]} {
    %c0 = arith.constant 0 : index
    %c0_0 = arith.constant 0 : index
    %c0_1 = arith.constant 0 : index
    %0 = vector.load %arg2[%c0, %c0_0, %c0_1] : memref<1x5x16xf32, #tpu.memory_space<vmem>>, vector<1x5x16xf32>
    %1 = vector.shape_cast %0 : vector<1x5x16xf32> to vector<5x16xf32>
    %c0_2 = arith.constant 0 : index
    %c0_3 = arith.constant 0 : index
    %c0_4 = arith.constant 0 : index
    %2 = vector.load %arg3[%c0_2, %c0_3, %c0_4] : memref<1x5x128xf32, #tpu.memory_space<vmem>>, vector<1x5x128xf32>
    %3 = vector.shape_cast %2 : vector<1x5x128xf32> to vector<5x128xf32>
    %cst = arith.constant dense<0.000000e+00> : vector<16x128xf32>
    %4 = tpu.matmul %1, %3, %cst {dimension_numbers = #tpu.dot_dimension_numbers<[0], [0], [1], [1], [0, 1, 1, 1], [], []>} : vector<5x16xf32>, vector<5x128xf32>, vector<16x128xf32> -> vector<16x128xf32>
    %cst_5 = arith.constant 0.000000e+00 : f32
    %5 = vector.broadcast %cst_5 : f32 to vector<16x128xf32>
    %6 = arith.maximumf %4, %5 : vector<16x128xf32>
    %7 = tpu.iota {dimensions = array<i32: 1>} : vector<16x128xi32>
    %cst_6 = arith.constant 0.000000e+00 : f32
    %8 = vector.broadcast %cst_6 : f32 to vector<16x128xf32>
    %cst_7 = arith.constant 0.000000e+00 : f32
    %9 = vector.broadcast %cst_7 : f32 to vector<16x1xf32>
    %cst_8 = arith.constant dense<0x7F800000> : vector<16xf32>
    %10 = vector.multi_reduction <minimumf>, %6, %cst_8 [1] : vector<16x128xf32> to vector<16xf32>
    %11 = vector.shape_cast %10 : vector<16xf32> to vector<16x1xf32>
    %12 = vector.broadcast %11 : vector<16x1xf32> to vector<16x128xf32>
    %13 = arith.cmpf oeq, %6, %12 : vector<16x128xf32>
    %c128_i32 = arith.constant 128 : i32
    %14 = vector.broadcast %c128_i32 : i32 to vector<16x128xi32>
    %15 = arith.select %13, %7, %14 : vector<16x128xi1>, vector<16x128xi32>
    %cst_9 = arith.constant dense<2147483647> : vector<16xi32>
    %16 = vector.multi_reduction <minsi>, %15, %cst_9 [1] : vector<16x128xi32> to vector<16xi32>
    %17 = vector.shape_cast %16 : vector<16xi32> to vector<16x1xi32>
    %18 = vector.broadcast %17 : vector<16x1xi32> to vector<16x128xi32>
    %19 = arith.cmpi eq, %7, %18 : vector<16x128xi32>
    %cst_10 = arith.constant 9.99999993E-9 : f32
    %20 = vector.broadcast %cst_10 : f32 to vector<16x1xf32>
    %21 = arith.addf %11, %20 : vector<16x1xf32>
    %22 = tpu.reciprocal %21 : vector<16x1xf32> -> vector<16x1xf32>
    %cst_11 = arith.constant 0.000000e+00 : f32
    %23 = vector.shape_cast %22 : vector<16x1xf32> to vector<16x1xf32>
    %24 = vector.broadcast %23 : vector<16x1xf32> to vector<16x128xf32>
    %25 = vector.broadcast %cst_11 : f32 to vector<16x128xf32>
    %26 = arith.select %19, %24, %25 : vector<16x128xi1>, vector<16x128xf32>
    %27 = arith.addf %8, %26 : vector<16x128xf32>
    %28 = arith.addf %9, %22 : vector<16x1xf32>
    %cst_12 = arith.constant 0x7F800000 : f32
    %29 = vector.broadcast %cst_12 : f32 to vector<16x128xf32>
    %30 = arith.select %19, %29, %6 : vector<16x128xi1>, vector<16x128xf32>
    %cst_13 = arith.constant dense<0x7F800000> : vector<16xf32>
    %31 = vector.multi_reduction <minimumf>, %30, %cst_13 [1] : vector<16x128xf32> to vector<16xf32>
    %32 = vector.shape_cast %31 : vector<16xf32> to vector<16x1xf32>
    %33 = vector.broadcast %32 : vector<16x1xf32> to vector<16x128xf32>
    %34 = arith.cmpf oeq, %30, %33 : vector<16x128xf32>
    %c128_i32_14 = arith.constant 128 : i32
    %35 = vector.broadcast %c128_i32_14 : i32 to vector<16x128xi32>
    %36 = arith.select %34, %7, %35 : vector<16x128xi1>, vector<16x128xi32>
    %cst_15 = arith.constant dense<2147483647> : vector<16xi32>
    %37 = vector.multi_reduction <minsi>, %36, %cst_15 [1] : vector<16x128xi32> to vector<16xi32>
    %38 = vector.shape_cast %37 : vector<16xi32> to vector<16x1xi32>
    %39 = vector.broadcast %38 : vector<16x1xi32> to vector<16x128xi32>
    %40 = arith.cmpi eq, %7, %39 : vector<16x128xi32>
    %cst_16 = arith.constant 9.99999993E-9 : f32
    %41 = vector.broadcast %cst_16 : f32 to vector<16x1xf32>
    %42 = arith.addf %32, %41 : vector<16x1xf32>
    %43 = tpu.reciprocal %42 : vector<16x1xf32> -> vector<16x1xf32>
    %cst_17 = arith.constant 0.000000e+00 : f32
    %44 = vector.shape_cast %43 : vector<16x1xf32> to vector<16x1xf32>
    %45 = vector.broadcast %44 : vector<16x1xf32> to vector<16x128xf32>
    %46 = vector.broadcast %cst_17 : f32 to vector<16x128xf32>
    %47 = arith.select %40, %45, %46 : vector<16x128xi1>, vector<16x128xf32>
    %48 = arith.addf %27, %47 : vector<16x128xf32>
    %49 = arith.addf %28, %43 : vector<16x1xf32>
    %cst_18 = arith.constant 0x7F800000 : f32
    %50 = vector.broadcast %cst_18 : f32 to vector<16x128xf32>
    %51 = arith.select %40, %50, %30 : vector<16x128xi1>, vector<16x128xf32>
    %cst_19 = arith.constant dense<0x7F800000> : vector<16xf32>
    %52 = vector.multi_reduction <minimumf>, %51, %cst_19 [1] : vector<16x128xf32> to vector<16xf32>
    %53 = vector.shape_cast %52 : vector<16xf32> to vector<16x1xf32>
    %54 = vector.broadcast %53 : vector<16x1xf32> to vector<16x128xf32>
    %55 = arith.cmpf oeq, %51, %54 : vector<16x128xf32>
    %c128_i32_20 = arith.constant 128 : i32
    %56 = vector.broadcast %c128_i32_20 : i32 to vector<16x128xi32>
    %57 = arith.select %55, %7, %56 : vector<16x128xi1>, vector<16x128xi32>
    %cst_21 = arith.constant dense<2147483647> : vector<16xi32>
    %58 = vector.multi_reduction <minsi>, %57, %cst_21 [1] : vector<16x128xi32> to vector<16xi32>
    %59 = vector.shape_cast %58 : vector<16xi32> to vector<16x1xi32>
    %60 = vector.broadcast %59 : vector<16x1xi32> to vector<16x128xi32>
    %61 = arith.cmpi eq, %7, %60 : vector<16x128xi32>
    %cst_22 = arith.constant 9.99999993E-9 : f32
    %62 = vector.broadcast %cst_22 : f32 to vector<16x1xf32>
    %63 = arith.addf %53, %62 : vector<16x1xf32>
    %64 = tpu.reciprocal %63 : vector<16x1xf32> -> vector<16x1xf32>
    %cst_23 = arith.constant 0.000000e+00 : f32
    %65 = vector.shape_cast %64 : vector<16x1xf32> to vector<16x1xf32>
    %66 = vector.broadcast %65 : vector<16x1xf32> to vector<16x128xf32>
    %67 = vector.broadcast %cst_23 : f32 to vector<16x128xf32>
    %68 = arith.select %61, %66, %67 : vector<16x128xi1>, vector<16x128xf32>
    %69 = arith.addf %48, %68 : vector<16x128xf32>
    %70 = arith.addf %49, %64 : vector<16x1xf32>
    %71 = tpu.reciprocal %70 : vector<16x1xf32> -> vector<16x1xf32>
    %c0_24 = arith.constant 0 : index
    %c0_25 = arith.constant 0 : index
    %c0_26 = arith.constant 0 : index
    %72 = vector.load %arg4[%c0_24, %c0_25, %c0_26] : memref<1x128x128xf32, #tpu.memory_space<vmem>>, vector<1x128x128xf32>
    %73 = vector.shape_cast %72 : vector<1x128x128xf32> to vector<128x128xf32>
    %cst_27 = arith.constant dense<0.000000e+00> : vector<16x128xf32>
    %74 = tpu.matmul %69, %73, %cst_27 {dimension_numbers = #tpu.dot_dimension_numbers<[1], [0], [0], [1], [0, 0, 1, 1], [], []>} : vector<16x128xf32>, vector<128x128xf32>, vector<16x128xf32> -> vector<16x128xf32>
    %75 = vector.broadcast %71 : vector<16x1xf32> to vector<16x128xf32>
    %76 = arith.mulf %74, %75 : vector<16x128xf32>
    %c0_28 = arith.constant 0 : index
    %c0_29 = arith.constant 0 : index
    %c0_30 = arith.constant 0 : index
    %77 = vector.load %arg5[%c0_28, %c0_29, %c0_30] : memref<1x16x128xf32, #tpu.memory_space<vmem>>, vector<1x16x128xf32>
    %78 = vector.shape_cast %77 : vector<1x16x128xf32> to vector<16x128xf32>
    %79 = vector.shape_cast %76 : vector<16x128xf32> to vector<1x16x128xf32>
    tpu.vector_store %arg5[%c0_28, %c0_29, %c0_30], %79 {strides = array<i32>} : memref<1x16x128xf32, #tpu.memory_space<vmem>>, vector<1x16x128xf32>,
    return
  }
  func.func @transform_0(%arg0: i32, %arg1: i32) -> (i32, i32, i32) {
    %c0_i32 = arith.constant 0 : i32
    %c0_i32_0 = arith.constant 0 : i32
    return %arg0, %c0_i32, %arg1 : i32, i32, i32
  }
  func.func @transform_1(%arg0: i32, %arg1: i32) -> (i32, i32, i32) {
    %c0_i32 = arith.constant 0 : i32
    %c0_i32_0 = arith.constant 0 : i32
    %c0_i32_1 = arith.constant 0 : i32
    return %arg0, %c0_i32, %c0_i32_0 : i32, i32, i32
  }
  func.func @transform_2(%arg0: i32, %arg1: i32) -> (i32, i32, i32) {
    %c0_i32 = arith.constant 0 : i32
    %c0_i32_0 = arith.constant 0 : i32
    %c0_i32_1 = arith.constant 0 : i32
    return %arg0, %c0_i32, %c0_i32_0 : i32, i32, i32
  }
  func.func @transform_3(%arg0: i32, %arg1: i32) -> (i32, i32, i32) {
    %c0_i32 = arith.constant 0 : i32
    %c0_i32_0 = arith.constant 0 : i32
    return %arg0, %arg1, %c0_i32 : i32, i32, i32
  }
}

</mosaic_0001>

<llo_original>
// kernel: tpu_custom_call.1
$region0: #{tpu_custom_call.1}
  #allocation0 [shape = 'u32[]', space=smem, size = 0x4, offset = 0x4, fixed_abs, tag = 'smem constant byte address 0x4 - core index']
  #allocation1 [shape = 'u32[144,128]{1,0:T(1,128)}', space=vmem, size = 0x12000, scoped, tag = 'internal scratch']
  %s0 = inlined_call_operand.vmem [shape: f32[2,5,16], index: 0, kind: input, shape index: {}]
  %s1 = inlined_call_operand.vmem [shape: f32[2,5,128], index: 1, kind: input, shape index: {}]
  %s2 = inlined_call_operand.hbm [shape: f32[2,128,128], index: 2, kind: input, shape index: {}]
  %s3 = inlined_call_operand.hbm [shape: f32[2,16,128], index: 3, kind: output, shape index: {}]
  %s4 = sld [smem:[#allocation0]]
  $region49: #{tpu_custom_call.1} parent=0
    _
  %s6 = ssub.s32 1, %s4
  %s7 = scalar_select 0, %s6, %s4
  $region1: #{tpu_custom_call.1} parent=0
    #allocation2 [shape = 'u8[131072]{0}', space=vmem, size = 0x20000, scoped, tag = 'input window, operand 2']
    #allocation3 [shape = 's32[2]{0}', space=sflag, size = 0x8, scoped, tag = 'scoped memory for tpu_custom_call.1']
    #allocation4 [shape = 's32[2]{0}', space=sflag, size = 0x8, scoped, tag = 'scoped memory for tpu_custom_call.1']
    #allocation5 [shape = 'u8[16384]{0}', space=vmem, size = 0x4000, scoped, tag = 'output window, operand 0']
    %8 = vsyncpa [#allocation3], 0
    %s9 = scalar_lea.sflag [#allocation3], 1
    %10 = vsyncpa %s9, 0
    %11 = vsyncpa [#allocation4], 0
    %s12 = scalar_lea.sflag [#allocation4], 1
    %13 = vsyncpa %s12, 0
    loop: start=0, step=1, limit=4
    $region2: #{tpu_custom_call.1} parent=1 // loop_pre_header
      _
    $region3: #{tpu_custom_call.1} parent=1 // loop_header
      %s15 = sphi 0, %s19
      %p16 = scmp.ge.s32.totalorder %s15, 4
      %s22 = sphi 0, %s34
      %s23 = sphi 0, %s30
      %s24 = sphi 0, %s22
      %s25 = sphi 0, %s23
      %s26 = sphi 0, %s24
      %s27 = sphi 0, %s25
      %s39 = sphi 0, %s41
      %s42 = sphi 0, %s39
      %s43 = sphi 0, %s42
      %s59 = sphi 0, %s43
      %s65 = sphi 0, %s67
      %s68 = sphi 0, %s65
      %s69 = sphi 0, %s68
      %s85 = sphi 0, %s69
      %s91 = sphi 0, %s93
      %s94 = sphi 0, %s91
      %s95 = sphi 0, %s94
      %s111 = sphi 0, %s95
      %s119 = sphi 0, %s121
      %s122 = sphi 0, %s119
      %s123 = sphi 0, %s122
      %s139 = sphi 0, %s123
    $region4: #{tpu_custom_call.1} parent=1 // loop_header_branch
      %18 = sbr.rel (%p16) target = $region8
    $region5: #{tpu_custom_call.1} parent=1 // loop_body
      %s20 = ssub.s32 %s15, 1
      %s21 = ssub.s32 %s15, 2
      %s28 = sadd.s32 1, %s23
      %p29 = scmp.ge.s32.totalorder %s28, 1
      %s30 = scalar_select %p29, 0, %s28
      %s31 = sadd.s32 1, %s22
      %s32 = scalar_select %p29, %s31, %s22
      %p33 = scmp.ge.s32.totalorder %s32, 2
      %s34 = scalar_select %p33, 0, %s32
      %s35 = ssub.s32 %s22, %s34
      %s36 = ssub.s32 %s23, %s30
      %s37 = sor.u32 %s35, %s36
      %p38 = scmp.eq.s32.totalorder %s37, 0
      %s40 = sadd.s32 %s39, 1
      %s41 = scalar_select %p38, %s39, %s40
      %p44 = pneg %p38
      %p45 = scmp.eq.s32.totalorder %s15, 1
      %p46 = por %p44, %p45
      %p47 = scmp.ne.s32.totalorder %s39, %s42
      %p48 = scmp.eq.s32.totalorder %s15, 0
      %p49 = por %p47, %p48
      %p50 = scmp.ne.s32.totalorder %s39, %s42
      %p51 = scmp.eq.s32.totalorder %s20, 1
      %p52 = por %p50, %p51
      %p53 = scmp.ne.s32.totalorder %s42, %s43
      %p54 = scmp.eq.s32.totalorder %s20, 0
      %p55 = por %p53, %p54
      %p56 = scmp.ne.s32.totalorder %s42, %s43
      %p57 = scmp.eq.s32.totalorder %s21, 1
      %p58 = por %p56, %p57
      %p60 = scmp.ne.s32.totalorder %s43, %s59
      %p61 = scmp.eq.s32.totalorder %s21, 0
      %p62 = por %p60, %p61
      %s63 = ssub.s32 %s22, %s34
      %p64 = scmp.eq.s32.totalorder %s63, 0
      %s66 = sadd.s32 %s65, 1
      %s67 = scalar_select %p64, %s65, %s66
      %p70 = pneg %p64
      %p71 = scmp.eq.s32.totalorder %s15, 1
      %p72 = por %p70, %p71
      %p73 = scmp.ne.s32.totalorder %s65, %s68
      %p74 = scmp.eq.s32.totalorder %s15, 0
      %p75 = por %p73, %p74
      %p76 = scmp.ne.s32.totalorder %s65, %s68
      %p77 = scmp.eq.s32.totalorder %s20, 1
      %p78 = por %p76, %p77
      %p79 = scmp.ne.s32.totalorder %s68, %s69
      %p80 = scmp.eq.s32.totalorder %s20, 0
      %p81 = por %p79, %p80
      %p82 = scmp.ne.s32.totalorder %s68, %s69
      %p83 = scmp.eq.s32.totalorder %s21, 1
      %p84 = por %p82, %p83
      %p86 = scmp.ne.s32.totalorder %s69, %s85
      %p87 = scmp.eq.s32.totalorder %s21, 0
      %p88 = por %p86, %p87
      %s89 = ssub.s32 %s22, %s34
      %p90 = scmp.eq.s32.totalorder %s89, 0
      %s92 = sadd.s32 %s91, 1
      %s93 = scalar_select %p90, %s91, %s92
      %p96 = pneg %p90
      %p97 = scmp.eq.s32.totalorder %s15, 1
      %p98 = por %p96, %p97
      %p99 = scmp.ne.s32.totalorder %s91, %s94
      %p100 = scmp.eq.s32.totalorder %s15, 0
      %p101 = por %p99, %p100
      %p102 = scmp.ne.s32.totalorder %s91, %s94
      %p103 = scmp.eq.s32.totalorder %s20, 1
      %p104 = por %p102, %p103
      %p105 = scmp.ne.s32.totalorder %s94, %s95
      %p106 = scmp.eq.s32.totalorder %s20, 0
      %p107 = por %p105, %p106
      %p108 = scmp.ne.s32.totalorder %s94, %s95
      %p109 = scmp.eq.s32.totalorder %s21, 1
      %p110 = por %p108, %p109
      %p112 = scmp.ne.s32.totalorder %s95, %s111
      %p113 = scmp.eq.s32.totalorder %s21, 0
      %p114 = por %p112, %p113
      %s115 = ssub.s32 %s22, %s34
      %s116 = ssub.s32 %s23, %s30
      %s117 = sor.u32 %s115, %s116
      %p118 = scmp.eq.s32.totalorder %s117, 0
      %s120 = sadd.s32 %s119, 1
      %s121 = scalar_select %p118, %s119, %s120
      %p124 = pneg %p118
      %p125 = scmp.eq.s32.totalorder %s15, 1
      %p126 = por %p124, %p125
      %p127 = scmp.ne.s32.totalorder %s119, %s122
      %p128 = scmp.eq.s32.totalorder %s15, 0
      %p129 = por %p127, %p128
      %p130 = scmp.ne.s32.totalorder %s119, %s122
      %p131 = scmp.eq.s32.totalorder %s20, 1
      %p132 = por %p130, %p131
      %p133 = scmp.ne.s32.totalorder %s122, %s123
      %p134 = scmp.eq.s32.totalorder %s20, 0
      %p135 = por %p133, %p134
      %p136 = scmp.ne.s32.totalorder %s122, %s123
      %p137 = scmp.eq.s32.totalorder %s21, 1
      %p138 = por %p136, %p137
      %p140 = scmp.ne.s32.totalorder %s123, %s139
      %p141 = scmp.eq.s32.totalorder %s21, 0
      %p142 = por %p140, %p141
      %p143 = scmp.le.s32.totalorder 1, %s15
      %p144 = scmp.lt.s32.totalorder %s15, 3
      %p145 = pnand %p143, %p144
      %p146 = pneg %p145
      // Predicated region
      $region9: #{tpu_custom_call.1} parent=5 // pred_check
        _
      $region10: #{tpu_custom_call.1} parent=5 // pred_check_branch
        %148 = sbr.rel (%p145) target = $region12
      $region11: #{tpu_custom_call.1} parent=5 // pred_region
        %s149 = ssub.s32 %s15, 1
      $region12: #{tpu_custom_call.1} parent=5 // pred_fallthru
        _
      %p150 = scmp.lt.s32.totalorder %s15, 2
      // Predicated region
      $region13: #{tpu_custom_call.1} parent=5 // pred_check
        %p151 = pneg %p150
      $region14: #{tpu_custom_call.1} parent=5 // pred_check_branch
        %153 = sbr.rel (%p151) target = $region16
      $region15: #{tpu_custom_call.1} parent=5 // pred_region
        // Predicated region
        $region17: #{tpu_custom_call.1} parent=15 // pred_check
          %p154 = pneg %p49
        $region18: #{tpu_custom_call.1} parent=15 // pred_check_branch
          %156 = sbr.rel (%p154) target = $region20
        $region19: #{tpu_custom_call.1} parent=15 // pred_region
          %p157 = scmp.lt.s32.totalorder %s22, 1
          %s158 = scalar_select %p157, %s22, 1
          %p159 = scmp.lt.s32.totalorder %s23, 0
          %s160 = scalar_select %p159, %s23, 0
          %s161 = sadd.s32 %s160, %s158
          %s162 = smul.addr %s161, 8
          %s163 = scalar_lea.vmem %s0, %s162
        $region20: #{tpu_custom_call.1} parent=15 // pred_fallthru
          _
        // Predicated region
        $region21: #{tpu_custom_call.1} parent=15 // pred_check
          %p164 = pneg %p75
        $region22: #{tpu_custom_call.1} parent=15 // pred_check_branch
          %166 = sbr.rel (%p164) target = $region24
        $region23: #{tpu_custom_call.1} parent=15 // pred_region
          %p167 = scmp.lt.s32.totalorder %s22, 1
          %s168 = scalar_select %p167, %s22, 1
          %s169 = smul.addr %s168, 8
          %s170 = scalar_lea.vmem %s1, %s169
        $region24: #{tpu_custom_call.1} parent=15 // pred_fallthru
          _
        // Predicated region
        $region25: #{tpu_custom_call.1} parent=15 // pred_check
          %p171 = pneg %p101
        $region26: #{tpu_custom_call.1} parent=15 // pred_check_branch
          %173 = sbr.rel (%p171) target = $region28
        $region27: #{tpu_custom_call.1} parent=15 // pred_region
          %s174 = sand.u32 %s91, 1
          %s175 = scalar_lea.sflag [#allocation3], %s174
          %s176 = sand.u32 %s91, 1
          %s177 = smul.addr %s176, 128
          %s178 = scalar_lea.vmem [#allocation2], %s177
          %s180 = ssub.s32 2048, 2048
          %181 = vsyncadd %s175, %s180
          %s182 = smul.addr %s22, 16
          %s183 = smul.addr %s182, 128
          %s184 = scalar_lea.hbm %s2, %s183
          %s185 = sshll.u32 %s178, 4
          %s186 = int_to_ptr.vmem [resolvable:$true] %s185
          %191 = dma.hbm_to_vmem [thread:$0]  %s184, 2048, %s186, %s175, 128, 128, 8
        $region28: #{tpu_custom_call.1} parent=15 // pred_fallthru
          _
      $region16: #{tpu_custom_call.1} parent=5 // pred_fallthru
        _
      %p192 = scmp.le.s32.totalorder 1, %s15
      %p193 = scmp.lt.s32.totalorder %s15, 3
      %p194 = pnand %p192, %p193
      %p195 = pneg %p194
      // Predicated region
      $region29: #{tpu_custom_call.1} parent=5 // pred_check
        _
      $region30: #{tpu_custom_call.1} parent=5 // pred_check_branch
        %197 = sbr.rel (%p194) target = $region32
      $region31: #{tpu_custom_call.1} parent=5 // pred_region
        %s198 = ssub.s32 %s15, 1
        %s199 = sand.u32 %s94, 1
        %s200 = scalar_lea.sflag [#allocation3], %s199
        %s201 = sand.u32 %s94, 1
        %s202 = smul.addr %s201, 128
        %s203 = scalar_lea.vmem [#allocation2], %s202
        // Predicated region
        $region33: #{tpu_custom_call.1} parent=31 // pred_check
          %p204 = pneg %p107
        $region34: #{tpu_custom_call.1} parent=31 // pred_check_branch
          %206 = sbr.rel (%p204) target = $region36
        $region35: #{tpu_custom_call.1} parent=31 // pred_region
          %207 = dma.done %s200, 2048
        $region36: #{tpu_custom_call.1} parent=31 // pred_fallthru
          _
        %p208 = scmp.lt.s32.totalorder %s24, 1
        %s209 = scalar_select %p208, %s24, 1
        %p210 = scmp.lt.s32.totalorder %s25, 0
        %s211 = scalar_select %p210, %s25, 0
        %s212 = sadd.s32 %s211, %s209
        %s213 = smul.addr %s212, 8
        %s214 = scalar_lea.vmem %s0, %s213
        %p215 = pneg %p55
        %p216 = pneg %p52
        %p217 = scmp.lt.s32.totalorder %s24, 1
        %s218 = scalar_select %p217, %s24, 1
        %s219 = smul.addr %s218, 8
        %s220 = scalar_lea.vmem %s1, %s219
        %p221 = pneg %p81
        %p222 = pneg %p78
        %s223 = sand.u32 %s94, 1
        %s224 = scalar_lea.sflag [#allocation3], %s223
        %s225 = sand.u32 %s94, 1
        %s226 = smul.addr %s225, 128
        %s227 = scalar_lea.vmem [#allocation2], %s226
        %p228 = pneg %p107
        %p229 = pneg %p104
        %p230 = pneg %p135
        %p231 = pneg %p132
        %s232 = sand.u32 %s122, 1
        %s233 = scalar_lea.sflag [#allocation4], %s232
        %s234 = sand.u32 %s122, 1
        %s235 = smul.addr %s234, 16
        %s236 = scalar_lea.vmem [#allocation5], %s235
        %p237 = scmp.lt.s32.totalorder %s24, 1
        %s238 = scalar_select %p237, %s24, 1
        %p239 = scmp.lt.s32.totalorder %s25, 0
        %s240 = scalar_select %p239, %s25, 0
        %s241 = sadd.s32 %s240, %s238
        %s242 = smul.addr %s241, 8
        %s243 = scalar_lea.vmem %s0, %s242
        %p244 = scmp.lt.s32.totalorder %s24, 1
        %s245 = scalar_select %p244, %s24, 1
        %s246 = smul.addr %s245, 8
        %s247 = scalar_lea.vmem %s1, %s246
        %s248 = smul.u32 2, %s25
        %v249 = vld [vmem:[%s243] sm:$0x1f]
        %v250 = vld [vmem:[%s247] sm:$0x1f]
        %251 = vxpose.xlu0.b32.start [1/16] %v249, 128
        %252 = vxpose.xlu0.b32.cont [2/16] 0.0, 128
        %253 = vxpose.xlu0.b32.cont [3/16] 0.0, 128
        %254 = vxpose.xlu0.b32.cont [4/16] 0.0, 128
        %255 = vxpose.xlu0.b32.cont [5/16] 0.0, 128
        %256 = vxpose.xlu0.b32.cont [6/16] 0.0, 128
        %257 = vxpose.xlu0.b32.cont [7/16] 0.0, 128
        %258 = vxpose.xlu0.b32.cont [8/16] 0.0, 128
        %259 = vxpose.xlu0.b32.cont [9/16] 0.0, 128
        %260 = vxpose.xlu0.b32.cont [10/16] 0.0, 128
        %261 = vxpose.xlu0.b32.cont [11/16] 0.0, 128
        %262 = vxpose.xlu0.b32.cont [12/16] 0.0, 128
        %263 = vxpose.xlu0.b32.cont [13/16] 0.0, 128
        %264 = vxpose.xlu0.b32.cont [14/16] 0.0, 128
        %265 = vxpose.xlu0.b32.cont [15/16] 0.0, 128
        %266 = vxpose.xlu0.b32.end [16/16] 0.0, 128
        %v267 = vpop.trf.xlu0
        %v268 = vpop.trf.xlu0
        %v269 = vpop.trf.xlu0
        %v270 = vpop.trf.xlu0
        %v271 = vpop.trf.xlu0
        %v272 = vpop.trf.xlu0
        %v273 = vpop.trf.xlu0
        %v274 = vpop.trf.xlu0
        %v275 = vpop.trf.xlu0
        %v276 = vpop.trf.xlu0
        %v277 = vpop.trf.xlu0
        %v278 = vpop.trf.xlu0
        %v279 = vpop.trf.xlu0
        %v280 = vpop.trf.xlu0
        %v281 = vpop.trf.xlu0
        %v282 = vpop.trf.xlu0
        %vm283 = vcmask 39936
        %v285 = vsel %vm283, %v267, 0
        %v288 = vsel %vm283, %v268, 0
        %vm290 = vcmask 1044480
        %v292 = vsel %vm290, %v250, 0
        %294 = vmatprep.subr.mxu0 0.0
        %295 = vmatpush1.msra.mxu0 %v292
        %296 = vmatprep.subr.mxu0 0.0
        %297 = vmatpush1.msra.mxu0 0.0
        %298 = vmatprep.subr.mxu0 0.0
        %299 = vmatpush1.msra.mxu0 0.0
        %300 = vmatprep.subr.mxu0 0.0
        %301 = vmatpush1.msra.mxu0 0.0
        %302 = vmatprep.subr.mxu0 0.0
        %303 = vmatpush1.msra.mxu0 0.0
        %304 = vmatprep.subr.mxu0 0.0
        %305 = vmatpush1.msra.mxu0 0.0
        %306 = vmatprep.subr.mxu0 0.0
        %307 = vmatpush1.msra.mxu0 0.0
        %308 = vmatprep.subr.mxu0 0.0
        %309 = vmatpush1.msra.mxu0 0.0
        %310 = vmatprep.subr.mxu0 0.0
        %311 = vmatpush1.msra.mxu0 0.0
        %312 = vmatprep.subr.mxu0 0.0
        %313 = vmatpush1.msra.mxu0 0.0
        %314 = vmatprep.subr.mxu0 0.0
        %315 = vmatpush1.msra.mxu0 0.0
        %316 = vmatprep.subr.mxu0 0.0
        %317 = vmatpush1.msra.mxu0 0.0
        %318 = vmatprep.subr.mxu0 0.0
        %319 = vmatpush1.msra.mxu0 0.0
        %320 = vmatprep.subr.mxu0 0.0
        %321 = vmatpush1.msra.mxu0 0.0
        %322 = vmatprep.subr.mxu0 0.0
        %323 = vmatpush1.msra.mxu0 0.0
        %324 = vmatprep.subr.mxu0 0.0
        %325 = vmatpush1.msra.mxu0 0.0
        %326 = vmatprep.subr.mxu0 0.0
        %327 = vmatpush1.msra.mxu0 0.0
        %328 = vmatprep.subr.mxu0 0.0
        %329 = vmatpush1.msra.mxu0 0.0
        %330 = vmatprep.subr.mxu0 0.0
        %331 = vmatpush1.msra.mxu0 0.0
        %332 = vmatprep.subr.mxu0 0.0
        %333 = vmatpush1.msra.mxu0 0.0
        %334 = vmatprep.subr.mxu0 0.0
        %335 = vmatpush1.msra.mxu0 0.0
        %336 = vmatprep.subr.mxu0 0.0
        %337 = vmatpush1.msra.mxu0 0.0
        %338 = vmatprep.subr.mxu0 0.0
        %339 = vmatpush1.msra.mxu0 0.0
        %340 = vmatprep.subr.mxu0 0.0
        %341 = vmatpush1.msra.mxu0 0.0
        %342 = vmatprep.subr.mxu0 0.0
        %343 = vmatpush1.msra.mxu0 0.0
        %344 = vmatprep.subr.mxu0 0.0
        %345 = vmatpush1.msra.mxu0 0.0
        %346 = vmatprep.subr.mxu0 0.0
        %347 = vmatpush1.msra.mxu0 0.0
        %348 = vmatprep.subr.mxu0 0.0
        %349 = vmatpush1.msra.mxu0 0.0
        %350 = vmatprep.subr.mxu0 0.0
        %351 = vmatpush1.msra.mxu0 0.0
        %352 = vmatprep.subr.mxu0 0.0
        %353 = vmatpush1.msra.mxu0 0.0
        %354 = vmatprep.subr.mxu0 0.0
        %355 = vmatpush1.msra.mxu0 0.0
        %356 = vmatprep.subr.mxu0 0.0
        %357 = vmatpush1.msra.mxu0 0.0
        %358 = vmatprep.mubr.f32.mxu0 0.0
        %359 = vmatmul.mubr.f32.gmra.mrb[0].mxu0 %v285
        %v360 = vpop.f32.mrb[0].mxu0
        %v361 = vadd.f32 0.0, %v360
        %v362 = vpop.f32.mrb[0].mxu0
        %363 = vmatprep.mubr.f32.mxu0 0.0
        %364 = vmatmul.mubr.f32.gmra.mrb[0].mxu0 %v288
        %v365 = vpop.f32.mrb[0].mxu0
        %v366 = vadd.f32 0.0, %v365
        %v367 = vpop.f32.mrb[0].mxu0
        %368 = vdwg.mxu0
        %v369 = vmax.f32 %v361, 0.0
        %v370 = vmax.f32 %v366, 0.0
        %v371 = vlaneseq
        %v372 = vand.u32 %v371, 127
        %373 = vmin.xlane.f32.xlu0 %v369
        %v374 = vpop.xlane.xlu0 %373
        %375 = vmin.xlane.f32.xlu0 %v370
        %v376 = vpop.xlane.xlu0 %375
        %vm377 = vcmp.eq.f32.partialorder %v369, %v374
        %vm378 = vcmp.eq.f32.partialorder %v370, %v376
        %v379 = vsel %vm377, %v372, 128
        %v380 = vsel %vm378, %v372, 128
        %v381 = vand.u32 %v379, 65535
        %v382 = vshra.s32 %v379, 16
        %v383 = vcvt.s32.f32 %v381
        %v384 = vcvt.s32.f32 %v382
        %385 = vmin.xlane.f32.xlu0 %v384
        %v386 = vpop.xlane.xlu0 %385
        %vm387 = vcmp.eq.f32.partialorder %v384, %v386
        %v388 = vsel %vm387, %v383, inf
        %389 = vmin.xlane.f32.xlu0 %v388
        %v390 = vpop.xlane.xlu0 %389
        %v391 = vcvt.f32.s32 %v390
        %v392 = vcvt.f32.s32 %v386
        %v393 = vshll.u32 %v392, 16
        %v394 = vadd.s32 %v393, %v391
        %v395 = vand.u32 %v380, 65535
        %v396 = vshra.s32 %v380, 16
        %v397 = vcvt.s32.f32 %v395
        %v398 = vcvt.s32.f32 %v396
        %399 = vmin.xlane.f32.xlu0 %v398
        %v400 = vpop.xlane.xlu0 %399
        %vm401 = vcmp.eq.f32.partialorder %v398, %v400
        %v402 = vsel %vm401, %v397, inf
        %403 = vmin.xlane.f32.xlu0 %v402
        %v404 = vpop.xlane.xlu0 %403
        %v405 = vcvt.f32.s32 %v404
        %v406 = vcvt.f32.s32 %v400
        %v407 = vshll.u32 %v406, 16
        %v408 = vadd.s32 %v407, %v405
        %vm409 = vcmp.eq.s32.totalorder %v372, %v394
        %vm410 = vcmp.eq.s32.totalorder %v372, %v408
        %v411 = vadd.f32 %v374, 1e-08
        %v412 = vadd.f32 %v376, 1e-08
        %v413 = vrcp.pop %v411
        %v414 = vrcp.pop %v412
        %v415 = vsel %vm409, %v413, 0.0
        %v416 = vsel %vm410, %v414, 0.0
        %v417 = vadd.f32 %v415, 0.0
        %v418 = vadd.f32 %v416, 0.0
        %v419 = vadd.f32 %v413, 0.0
        %v420 = vadd.f32 %v414, 0.0
        %v421 = vsel %vm409, inf, %v369
        %v422 = vsel %vm410, inf, %v370
        %423 = vmin.xlane.f32.xlu0 %v421
        %v424 = vpop.xlane.xlu0 %423
        %425 = vmin.xlane.f32.xlu0 %v422
        %v426 = vpop.xlane.xlu0 %425
        %vm427 = vcmp.eq.f32.partialorder %v421, %v424
        %vm428 = vcmp.eq.f32.partialorder %v422, %v426
        %v429 = vsel %vm427, %v372, 128
        %v430 = vsel %vm428, %v372, 128
        %v431 = vand.u32 %v429, 65535
        %v432 = vshra.s32 %v429, 16
        %v433 = vcvt.s32.f32 %v431
        %v434 = vcvt.s32.f32 %v432
        %435 = vmin.xlane.f32.xlu0 %v434
        %v436 = vpop.xlane.xlu0 %435
        %vm437 = vcmp.eq.f32.partialorder %v434, %v436
        %v438 = vsel %vm437, %v433, inf
        %439 = vmin.xlane.f32.xlu0 %v438
        %v440 = vpop.xlane.xlu0 %439
        %v441 = vcvt.f32.s32 %v440
        %v442 = vcvt.f32.s32 %v436
        %v443 = vshll.u32 %v442, 16
        %v444 = vadd.s32 %v443, %v441
        %v445 = vand.u32 %v430, 65535
        %v446 = vshra.s32 %v430, 16
        %v447 = vcvt.s32.f32 %v445
        %v448 = vcvt.s32.f32 %v446
        %449 = vmin.xlane.f32.xlu0 %v448
        %v450 = vpop.xlane.xlu0 %449
        %vm451 = vcmp.eq.f32.partialorder %v448, %v450
        %v452 = vsel %vm451, %v447, inf
        %453 = vmin.xlane.f32.xlu0 %v452
        %v454 = vpop.xlane.xlu0 %453
        %v455 = vcvt.f32.s32 %v454
        %v456 = vcvt.f32.s32 %v450
        %v457 = vshll.u32 %v456, 16
        %v458 = vadd.s32 %v457, %v455
        %vm459 = vcmp.eq.s32.totalorder %v372, %v444
        %vm460 = vcmp.eq.s32.totalorder %v372, %v458
        %v461 = vadd.f32 %v424, 1e-08
        %v462 = vadd.f32 %v426, 1e-08
        %v463 = vrcp.pop %v461
        %v464 = vrcp.pop %v462
        %v465 = vsel %vm459, %v463, 0.0
        %v466 = vsel %vm460, %v464, 0.0
        %v467 = vadd.f32 %v417, %v465
        %v468 = vadd.f32 %v418, %v466
        %v469 = vadd.f32 %v419, %v463
        %v470 = vadd.f32 %v420, %v464
        %v471 = vsel %vm459, inf, %v421
        %v472 = vsel %vm460, inf, %v422
        %473 = vmin.xlane.f32.xlu0 %v471
        %v474 = vpop.xlane.xlu0 %473
        %475 = vmin.xlane.f32.xlu0 %v472
        %v476 = vpop.xlane.xlu0 %475
        %vm477 = vcmp.eq.f32.partialorder %v471, %v474
        %vm478 = vcmp.eq.f32.partialorder %v472, %v476
        %v479 = vsel %vm477, %v372, 128
        %v480 = vsel %vm478, %v372, 128
        %v481 = vand.u32 %v479, 65535
        %v482 = vshra.s32 %v479, 16
        %v483 = vcvt.s32.f32 %v481
        %v484 = vcvt.s32.f32 %v482
        %485 = vmin.xlane.f32.xlu0 %v484
        %v486 = vpop.xlane.xlu0 %485
        %vm487 = vcmp.eq.f32.partialorder %v484, %v486
        %v488 = vsel %vm487, %v483, inf
        %489 = vmin.xlane.f32.xlu0 %v488
        %v490 = vpop.xlane.xlu0 %489
        %v491 = vcvt.f32.s32 %v490
        %v492 = vcvt.f32.s32 %v486
        %v493 = vshll.u32 %v492, 16
        %v494 = vadd.s32 %v493, %v491
        %v495 = vand.u32 %v480, 65535
        %v496 = vshra.s32 %v480, 16
        %v497 = vcvt.s32.f32 %v495
        %v498 = vcvt.s32.f32 %v496
        %499 = vmin.xlane.f32.xlu0 %v498
        %v500 = vpop.xlane.xlu0 %499
        %vm501 = vcmp.eq.f32.partialorder %v498, %v500
        %v502 = vsel %vm501, %v497, inf
        %503 = vmin.xlane.f32.xlu0 %v502
        %v504 = vpop.xlane.xlu0 %503
        %v505 = vcvt.f32.s32 %v504
        %v506 = vcvt.f32.s32 %v500
        %v507 = vshll.u32 %v506, 16
        %v508 = vadd.s32 %v507, %v505
        %vm509 = vcmp.eq.s32.totalorder %v372, %v494
        %vm510 = vcmp.eq.s32.totalorder %v372, %v508
        %v511 = vadd.f32 %v474, 1e-08
        %v512 = vadd.f32 %v476, 1e-08
        %v513 = vrcp.pop %v511
        %v514 = vrcp.pop %v512
        %v515 = vsel %vm509, %v513, 0.0
        %v516 = vsel %vm510, %v514, 0.0
        %v517 = vadd.f32 %v467, %v515
        %v518 = vadd.f32 %v468, %v516
        %v519 = vadd.f32 %v469, %v513
        %v520 = vadd.f32 %v470, %v514
        %v521 = vrcp.pop %v519
        %v522 = vrcp.pop %v520
        %v523 = vld [vmem:[%s203] sm:$0xff]
        %v524 = vld [vmem:[%s203 + $0x8] sm:$0xff]
        %v525 = vld [vmem:[%s203 + $0x10] sm:$0xff]
        %v526 = vld [vmem:[%s203 + $0x18] sm:$0xff]
        %v527 = vld [vmem:[%s203 + $0x20] sm:$0xff]
        %v528 = vld [vmem:[%s203 + $0x28] sm:$0xff]
        %v529 = vld [vmem:[%s203 + $0x30] sm:$0xff]
        %v530 = vld [vmem:[%s203 + $0x38] sm:$0xff]
        %v531 = vld [vmem:[%s203 + $0x40] sm:$0xff]
        %v532 = vld [vmem:[%s203 + $0x48] sm:$0xff]
        %v533 = vld [vmem:[%s203 + $0x50] sm:$0xff]
        %v534 = vld [vmem:[%s203 + $0x58] sm:$0xff]
        %v535 = vld [vmem:[%s203 + $0x60] sm:$0xff]
        %v536 = vld [vmem:[%s203 + $0x68] sm:$0xff]
        %v537 = vld [vmem:[%s203 + $0x70] sm:$0xff]
        %v538 = vld [vmem:[%s203 + $0x78] sm:$0xff]
        %539 = vmatprep.subr.mxu0 0.0
        %540 = vmatpush1.msra.mxu0 %v523
        %541 = vmatprep.subr.mxu0 0.0
        %542 = vmatpush1.msra.mxu0 %v524
        %543 = vmatprep.subr.mxu0 0.0
        %544 = vmatpush1.msra.mxu0 %v525
        %545 = vmatprep.subr.mxu0 0.0
        %546 = vmatpush1.msra.mxu0 %v526
        %547 = vmatprep.subr.mxu0 0.0
        %548 = vmatpush1.msra.mxu0 %v527
        %549 = vmatprep.subr.mxu0 0.0
        %550 = vmatpush1.msra.mxu0 %v528
        %551 = vmatprep.subr.mxu0 0.0
        %552 = vmatpush1.msra.mxu0 %v529
        %553 = vmatprep.subr.mxu0 0.0
        %554 = vmatpush1.msra.mxu0 %v530
        %555 = vmatprep.subr.mxu0 0.0
        %556 = vmatpush1.msra.mxu0 %v531
        %557 = vmatprep.subr.mxu0 0.0
        %558 = vmatpush1.msra.mxu0 %v532
        %559 = vmatprep.subr.mxu0 0.0
        %560 = vmatpush1.msra.mxu0 %v533
        %561 = vmatprep.subr.mxu0 0.0
        %562 = vmatpush1.msra.mxu0 %v534
        %563 = vmatprep.subr.mxu0 0.0
        %564 = vmatpush1.msra.mxu0 %v535
        %565 = vmatprep.subr.mxu0 0.0
        %566 = vmatpush1.msra.mxu0 %v536
        %567 = vmatprep.subr.mxu0 0.0
        %568 = vmatpush1.msra.mxu0 %v537
        %569 = vmatprep.subr.mxu0 0.0
        %570 = vmatpush1.msra.mxu0 %v538
        %571 = vmatprep.subr.mxu0 0.0
        %572 = vmatpush1.msra.mxu0 0.0
        %573 = vmatprep.subr.mxu0 0.0
        %574 = vmatpush1.msra.mxu0 0.0
        %575 = vmatprep.subr.mxu0 0.0
        %576 = vmatpush1.msra.mxu0 0.0
        %577 = vmatprep.subr.mxu0 0.0
        %578 = vmatpush1.msra.mxu0 0.0
        %579 = vmatprep.subr.mxu0 0.0
        %580 = vmatpush1.msra.mxu0 0.0
        %581 = vmatprep.subr.mxu0 0.0
        %582 = vmatpush1.msra.mxu0 0.0
        %583 = vmatprep.subr.mxu0 0.0
        %584 = vmatpush1.msra.mxu0 0.0
        %585 = vmatprep.subr.mxu0 0.0
        %586 = vmatpush1.msra.mxu0 0.0
        %587 = vmatprep.subr.mxu0 0.0
        %588 = vmatpush1.msra.mxu0 0.0
        %589 = vmatprep.subr.mxu0 0.0
        %590 = vmatpush1.msra.mxu0 0.0
        %591 = vmatprep.subr.mxu0 0.0
        %592 = vmatpush1.msra.mxu0 0.0
        %593 = vmatprep.subr.mxu0 0.0
        %594 = vmatpush1.msra.mxu0 0.0
        %595 = vmatprep.subr.mxu0 0.0
        %596 = vmatpush1.msra.mxu0 0.0
        %597 = vmatprep.subr.mxu0 0.0
        %598 = vmatpush1.msra.mxu0 0.0
        %599 = vmatprep.subr.mxu0 0.0
        %600 = vmatpush1.msra.mxu0 0.0
        %601 = vmatprep.subr.mxu0 0.0
        %602 = vmatpush1.msra.mxu0 0.0
        %603 = vmatprep.mubr.f32.mxu0 0.0
        %604 = vmatmul.mubr.f32.gmra.mrb[0].mxu0 %v517
        %v605 = vpop.f32.mrb[0].mxu0
        %v606 = vadd.f32 0.0, %v605
        %v607 = vpop.f32.mrb[0].mxu0
        %608 = vmatprep.mubr.f32.mxu0 0.0
        %609 = vmatmul.mubr.f32.gmra.mrb[0].mxu0 %v518
        %v610 = vpop.f32.mrb[0].mxu0
        %v611 = vadd.f32 0.0, %v610
        %v612 = vpop.f32.mrb[0].mxu0
        %613 = vdwg.mxu0
        %v614 = vmul.f32 %v606, %v521
        %v615 = vmul.f32 %v611, %v522
        %616 = vst [vmem:[%s236] sm:$0xff] %v614
        %617 = vst [vmem:[%s236 + $0x8] sm:$0xff] %v615
        %s618 = sand.u32 %s122, 1
        %s619 = scalar_lea.sflag [#allocation4], %s618
        %s620 = sand.u32 %s122, 1
        %s621 = smul.addr %s620, 16
        %s622 = scalar_lea.vmem [#allocation5], %s621
        // Predicated region
        $region37: #{tpu_custom_call.1} parent=31 // pred_check
          %p623 = pneg %p132
        $region38: #{tpu_custom_call.1} parent=31 // pred_check_branch
          %625 = sbr.rel (%p623) target = $region40
        $region39: #{tpu_custom_call.1} parent=31 // pred_region
          %s626 = smul.u32 2, %s25
          %s628 = ssub.s32 256, 256
          %629 = vsyncadd %s619, %s628
          %s630 = smul.addr %s24, 2
          %s631 = sadd.s32 %s626, %s630
          %s632 = smul.addr %s631, 128
          %s633 = scalar_lea.hbm %s3, %s632
          %s634 = sshll.u32 %s622, 4
          %s635 = int_to_ptr.vmem [resolvable:$true] %s634
          %640 = dma.vmem_to_hbm [thread:$0]  %s635, 256, %s633, %s619, 128, 128, 8
        $region40: #{tpu_custom_call.1} parent=31 // pred_fallthru
          _
      $region32: #{tpu_custom_call.1} parent=5 // pred_fallthru
        _
      %p641 = scmp.le.s32.totalorder 2, %s15
      // Predicated region
      $region41: #{tpu_custom_call.1} parent=5 // pred_check
        %p642 = pneg %p641
      $region42: #{tpu_custom_call.1} parent=5 // pred_check_branch
        %644 = sbr.rel (%p642) target = $region44
      $region43: #{tpu_custom_call.1} parent=5 // pred_region
        %s645 = ssub.s32 %s15, 2
        // Predicated region
        $region45: #{tpu_custom_call.1} parent=43 // pred_check
          %p646 = pneg %p138
        $region46: #{tpu_custom_call.1} parent=43 // pred_check_branch
          %648 = sbr.rel (%p646) target = $region48
        $region47: #{tpu_custom_call.1} parent=43 // pred_region
          %s649 = sand.u32 %s123, 1
          %s650 = scalar_lea.sflag [#allocation4], %s649
          %s651 = sand.u32 %s123, 1
          %s652 = smul.addr %s651, 16
          %s653 = scalar_lea.vmem [#allocation5], %s652
          %654 = dma.done %s650, 256
        $region48: #{tpu_custom_call.1} parent=43 // pred_fallthru
          _
      $region44: #{tpu_custom_call.1} parent=5 // pred_fallthru
        _
    $region6: #{tpu_custom_call.1} parent=1 // loop_footer
      %s19 = sadd.s32 1, %s15
    $region7: #{tpu_custom_call.1} parent=1 // loop_footer_branch
      %14 = sbr.rel target = $region3
    $region8: #{tpu_custom_call.1} parent=1 // loop_exit
      _
    %655 = vsyncpa [#allocation3], 1
    %s656 = scalar_lea.sflag [#allocation3], 1
    %657 = vsyncpa %s656, 1
    %658 = vsyncpa [#allocation4], 1
    %s659 = scalar_lea.sflag [#allocation4], 1
    %660 = vsyncpa %s659, 1

</llo_original>
